<compile_context>
chip_gen: v7x
topology: tpu7x:2x2x1
jax: 0.10.0
libtpu: 0.0.40
codegen_flags: <defaults>
</compile_context>

<pallas_src>
import functools

import jax
import jax.numpy as jnp
import numpy as np
from jax import lax
from jax.experimental import pallas as pl
from jax.experimental.pallas import tpu as pltpu

EXPANSION = 4
BN_EPS = 1e-5


def _round_up(x, m):
    return ((x + m - 1) // m) * m


def _choose_tile(m, target):
    """Pick a tile (multiple of 8) and the padded extent it divides."""
    t = min(target, _round_up(m, 8))
    return t, _round_up(m, t)


# ---------------------------------------------------------------------------
# Kernel 1/2: tiled matmul + bias + (optional) ReLU   (1x1 conv, 3x3-as-im2col)
# ---------------------------------------------------------------------------
def _mm_bias_act_kernel(x_ref, w_ref, b_ref, o_ref, *, relu):
    y = jnp.dot(x_ref[...], w_ref[...], preferred_element_type=jnp.float32)
    y = y + b_ref[...]
    if relu:
        y = jnp.maximum(y, 0.0)
    o_ref[...] = y.astype(o_ref.dtype)


def matmul_bias_act(x, w, b, *, relu, out_dtype, tile_m=512):
    M, K = x.shape
    N = w.shape[1]
    tm, Mp = _choose_tile(M, tile_m)
    if Mp != M:
        x = jnp.pad(x, ((0, Mp - M), (0, 0)))
    out = pl.pallas_call(
        functools.partial(_mm_bias_act_kernel, relu=relu),
        out_shape=jax.ShapeDtypeStruct((Mp, N), out_dtype),
        grid=(Mp // tm,),
        in_specs=[
            pl.BlockSpec((tm, K), lambda i: (i, 0)),   # activations: tiled over M
            pl.BlockSpec((K, N), lambda i: (0, 0)),    # weight: resident
            pl.BlockSpec((1, N), lambda i: (0, 0)),    # bias: resident
        ],
        out_specs=pl.BlockSpec((tm, N), lambda i: (i, 0)),
        compiler_params=pltpu.CompilerParams(dimension_semantics=("parallel",)),
    )(x, w, b)
    return out[:M] if Mp != M else out


# ---------------------------------------------------------------------------
# Kernel 3: fused  [1x1 conv w3 + BN + ReLU]  +  shortcut conv  +  SE  + output
# Two-phase grid (B, 2, spatial tiles):
#   phase 0: accumulate squeeze sum over spatial tiles; compute gates at last tile
#   phase 1: recompute res tile, apply gates, add shortcut, ReLU, store
# ---------------------------------------------------------------------------
def _fused_se_kernel(h2_ref, xs_ref, w3_ref, b3_ref, ws_ref, bs_ref,
                     ewa_ref, eba_ref, ewb_ref, ebb_ref,
                     o_ref, sq_acc, gate_sc, *, tile_s, s_total, c4, inv_count):
    ph = pl.program_id(1)
    s = pl.program_id(2)
    ns = pl.num_programs(2)

    # res = relu(h2 @ w3 + b3)  — recomputed in both phases (cheaper than an
    # HBM round trip for the full C4-wide feature map).
    res = jnp.dot(h2_ref[0], w3_ref[...], preferred_element_type=jnp.float32)
    res = jnp.maximum(res + b3_ref[...], 0.0)                 # (tile_s, C4) f32

    @pl.when(ph == 0)
    def _squeeze_phase():
        @pl.when(s == 0)
        def _():
            sq_acc[...] = jnp.zeros_like(sq_acc)

        # mask padded spatial rows so the global-average-pool is unbiased
        row = lax.broadcasted_iota(jnp.int32, (tile_s, 1), 0) + s * tile_s
        valid = (row < s_total).astype(jnp.float32)
        sq_acc[...] += jnp.sum(res * valid, axis=0, keepdims=True)

        @pl.when(s == ns - 1)
        def _gates():
            sq = sq_acc[...] * inv_count                       # (1, C4) GAP, f32
            # both SE branches share the squeeze vector; layer-1 weights are
            # concatenated, layer-2 weights are block-diagonal -> 2 matmuls total
            h = jnp.dot(sq, ewa_ref[...], preferred_element_type=jnp.float32)
            h = jnp.maximum(h + eba_ref[...], 0.0)             # (1, 2*hid)
            z = jnp.dot(h, ewb_ref[...], preferred_element_type=jnp.float32)
            z = z + ebb_ref[...]                               # (1, 2*C4)
            g = pl.reciprocal(1.0 + jnp.exp(-z), approx=True)  # sigmoid via EUP
            gate_sc[...] = g[:, :c4] * g[:, c4:]               # g1 * g2

    @pl.when(ph == 1)
    def _apply_phase():
        sc = jnp.dot(xs_ref[0], ws_ref[...], preferred_element_type=jnp.float32)
        sc = sc + bs_ref[...]
        o_ref[0] = jnp.maximum(res * gate_sc[...] + sc, 0.0).astype(o_ref.dtype)


def fused_conv3_shortcut_se(h2, xs, w3, b3, ws, bs, ewa, eba, ewb, ebb,
                            *, s_total, tile_s):
    B, Sp, C = h2.shape
    Cin = xs.shape[-1]
    C4 = w3.shape[1]
    hid2 = ewa.shape[1]
    ns = Sp // tile_s

    kern = functools.partial(_fused_se_kernel, tile_s=tile_s, s_total=s_total,
                             c4=C4, inv_count=1.0 / float(s_total))
    return pl.pallas_call(
        kern,
        out_shape=jax.ShapeDtypeStruct((B, Sp, C4), jnp.float32),
        grid=(B, 2, ns),
        in_specs=[
            pl.BlockSpec((1, tile_s, C), lambda b, p, s: (b, s, 0)),       # h2
            pl.BlockSpec((1, tile_s, Cin), lambda b, p, s: (b, s * p, 0)),  # xs (phase 1 only)
            pl.BlockSpec((C, C4), lambda b, p, s: (0, 0)),                 # w3
            pl.BlockSpec((1, C4), lambda b, p, s: (0, 0)),                 # b3
            pl.BlockSpec((Cin, C4), lambda b, p, s: (0, 0)),               # ws
            pl.BlockSpec((1, C4), lambda b, p, s: (0, 0)),                 # bs
            pl.BlockSpec((C4, hid2), lambda b, p, s: (0, 0)),              # SE layer-1 W
            pl.BlockSpec((1, hid2), lambda b, p, s: (0, 0)),               # SE layer-1 b
            pl.BlockSpec((hid2, 2 * C4), lambda b, p, s: (0, 0)),          # SE layer-2 W (block-diag)
            pl.BlockSpec((1, 2 * C4), lambda b, p, s: (0, 0)),             # SE layer-2 b
        ],
        # output blocks are only written in phase 1; during phase 0 the index
        # stays pinned at (b, 0, 0) so no garbage writeback is ever issued.
        out_specs=pl.BlockSpec((1, tile_s, C4), lambda b, p, s: (b, s * p, 0)),
        scratch_shapes=[pltpu.VMEM((1, C4), jnp.float32),   # squeeze sum
                        pltpu.VMEM((1, C4), jnp.float32)],  # gate (g1*g2)
        compiler_params=pltpu.CompilerParams(
            dimension_semantics=("parallel", "arbitrary", "arbitrary")),
    )(h2, xs, w3, b3, ws, bs, ewa, eba, ewb, ebb)


# ---------------------------------------------------------------------------
# Wrapper (layout conversion, im2col packing, SE weight packing)
# ---------------------------------------------------------------------------
def bottleneck_residual_se_block(x_nchw, params, stride):
    # TODO(synk): the multi-tensor list-input path (`for input_ in x[:-1]:
    # new_connection += input_`) is not implemented; single-tensor input only.
    x = jnp.transpose(x_nchw, (0, 2, 3, 1)).astype(jnp.float32)  # NCHW -> NHWC
    B, H, W, Cin = x.shape
    C = params["w1"].shape[1]
    C4 = params["w3"].shape[1]
    hid = params["e1wa"].shape[1]
    Ho = (H - 1) // stride + 1
    Wo = (W - 1) // stride + 1
    S = Ho * Wo

    bf = jnp.bfloat16
    xb = x.astype(bf)

    # --- stage 1: 1x1 conv + BN + ReLU (tiled, bf16 MXU, f32 accumulate) ---
    h1 = matmul_bias_act(xb.reshape(B * H * W, Cin), params["w1"].astype(bf),
                         params["b1"], relu=True, out_dtype=bf)
    h1 = h1.reshape(B, H, W, C)

    # --- stage 2: 3x3 conv (stride, pad=1) as ONE (M, 9C) x (9C, C) matmul ---
    # taps are concatenated along the channel/lane axis (bf16) so the kernel
    # sees a single contraction of depth 9*C fed by one BlockSpec.
    # TODO(synk): an in-kernel (pl.ANY + manual DMA) im2col would avoid the
    # XLA-side tap materialization entirely; kept in JAX for robustness.
    hp = jnp.pad(h1, ((0, 0), (1, 1), (1, 1), (0, 0)))
    taps = []
    for ky in range(3):
        for kx in range(3):
            taps.append(hp[:, ky: ky + (Ho - 1) * stride + 1: stride,
                           kx: kx + (Wo - 1) * stride + 1: stride, :])
    patches = jnp.concatenate(taps, axis=-1).reshape(B * S, 9 * C)   # bf16
    w2_flat = params["w2"].reshape(9 * C, C).astype(bf)
    h2 = matmul_bias_act(patches, w2_flat, params["b2"], relu=True, out_dtype=bf)
    h2 = h2.reshape(B, S, C)

    # --- shortcut input (strided).  Identity shortcut is expressed as an eye
    #     matmul so the fused kernel has a single code path (bf16-rounded). ---
    if stride != 1 or Cin != C4:
        ws, bs = params["ws"].astype(bf), params["bs"]
        xs = x[:, ::stride, ::stride, :].astype(bf).reshape(B, S, Cin)
    else:
        ws = jnp.eye(C4, dtype=bf)
        bs = jnp.zeros((1, C4), jnp.float32)
        xs = xb.reshape(B, S, C4)

    # --- packed SE weights: layer-1 concatenated, layer-2 block-diagonal ---
    ewa = jnp.concatenate([params["e1wa"], params["e2wa"]], axis=1)    # (C4, 2*hid)
    eba = jnp.concatenate([params["e1ba"], params["e2ba"]], axis=1)    # (1, 2*hid)
    ewb = jnp.zeros((2 * hid, 2 * C4), jnp.float32)
    ewb = ewb.at[:hid, :C4].set(params["e1wb"]).at[hid:, C4:].set(params["e2wb"])
    ebb = jnp.concatenate([params["e1bb"], params["e2bb"]], axis=1)    # (1, 2*C4)

    # --- fused conv3 + shortcut + SE + gating + add + ReLU ---
    tile_s, Sp = _choose_tile(S, 512)
    if Sp != S:
        h2 = jnp.pad(h2, ((0, 0), (0, Sp - S), (0, 0)))
        xs = jnp.pad(xs, ((0, 0), (0, Sp - S), (0, 0)))

    out = fused_conv3_shortcut_se(h2, xs, params["w3"].astype(bf), params["b3"],
                                  ws, bs, ewa, eba, ewb, ebb,
                                  s_total=S, tile_s=tile_s)
    out = out[:, :S, :].reshape(B, Ho, Wo, C4)
    out_nchw = jnp.transpose(out, (0, 3, 1, 2))
    # forward returns the growing list [x, relu(output)]
    return [x_nchw, out_nchw]


# ---------------------------------------------------------------------------
# Deterministic parameter init (BN folded into conv weight/bias, eval mode).
# Conv weights are rounded to bf16-representable f32 so the bf16 kernel and the
# f32 reference share identical weight values.
# ---------------------------------------------------------------------------
def init_params(key, in_channels, out_channels, r=16):
    C = out_channels
    C4 = out_channels * EXPANSION
    hid = max(C4 // r, 1)
    keys = iter(jax.random.split(key, 48))

    def w(shape, scale=0.1):
        return scale * jax.random.normal(next(keys), shape, jnp.float32)

    def bf16_round(a):
        return a.astype(jnp.bfloat16).astype(jnp.float32)

    def fold_bn(weight, bias, c):
        gamma = 1.0 + 0.1 * jax.random.normal(next(keys), (c,), jnp.float32)
        beta = 0.05 * jax.random.normal(next(keys), (c,), jnp.float32)
        mean = 0.05 * jax.random.normal(next(keys), (c,), jnp.float32)
        var = 1.0 + 0.1 * jax.random.uniform(next(keys), (c,), jnp.float32)
        s = gamma / jnp.sqrt(var + BN_EPS)
        return bf16_round(weight * s), ((bias - mean) * s + beta).reshape(1, c)

    w1, b1 = fold_bn(w((in_channels, C)), w((C,)), C)
    w2, b2 = fold_bn(w((9, C, C)), w((C,)), C)          # (ky*3+kx, Cin, Cout)
    w3, b3 = fold_bn(w((C, C4)), w((C4,)), C4)
    ws, bs = fold_bn(w((in_channels, C4)), w((C4,)), C4)

    return dict(
        w1=w1, b1=b1, w2=w2, b2=b2, w3=w3, b3=b3, ws=ws, bs=bs,
        e1wa=w((C4, hid)), e1ba=w((hid,)).reshape(1, hid),
        e1wb=w((hid, C4)), e1bb=w((C4,)).reshape(1, C4),
        e2wa=w((C4, hid)), e2ba=w((hid,)).reshape(1, hid),
        e2wb=w((hid, C4)), e2bb=w((C4,)).reshape(1, C4),
    )


# ---------------------------------------------------------------------------
# Pure-JAX f32 reference (same folded params) for validation
# ---------------------------------------------------------------------------
def reference(x_nchw, params, stride):
    x = jnp.transpose(x_nchw, (0, 2, 3, 1)).astype(jnp.float32)
    C = params["w1"].shape[1]
    h1 = jax.nn.relu(jnp.einsum("bhwc,cd->bhwd", x, params["w1"]) + params["b1"][0])
    w2 = params["w2"].reshape(3, 3, C, C)  # HWIO
    h2 = jax.nn.relu(
        lax.conv_general_dilated(h1, w2, (stride, stride), ((1, 1), (1, 1)),
                                 dimension_numbers=("NHWC", "HWIO", "NHWC"))
        + params["b2"][0])
    res = jax.nn.relu(jnp.einsum("bhwc,cd->bhwd", h2, params["w3"]) + params["b3"][0])
    xs = x[:, ::stride, ::stride, :]
    sc = jnp.einsum("bhwc,cd->bhwd", xs, params["ws"]) + params["bs"][0]
    sq = jnp.mean(res, axis=(1, 2))
    g1 = jax.nn.sigmoid(
        jax.nn.relu(sq @ params["e1wa"] + params["e1ba"][0]) @ params["e1wb"] + params["e1bb"][0])
    g2 = jax.nn.sigmoid(
        jax.nn.relu(sq @ params["e2wa"] + params["e2ba"][0]) @ params["e2wb"] + params["e2bb"][0])
    out = jax.nn.relu(res * g1[:, None, None, :] * g2[:, None, None, :] + sc)
    return jnp.transpose(out, (0, 3, 1, 2))


if __name__ == "__main__":
    key = jax.random.PRNGKey(0)
    kx, kp = jax.random.split(key)

    # Small shapes consistent with the module: in_ch=16, out_ch=32 -> out_ch*4=128
    B, Cin, H, W = 2, 16, 8, 8
    out_channels, stride = 32, 1

    x = jax.random.normal(kx, (B, Cin, H, W), jnp.float32)  # NCHW, like PyTorch
    params = init_params(kp, Cin, out_channels, r=16)

    outs = bottleneck_residual_se_block(x, params, stride)
    y = jax.block_until_ready(outs[-1])  # (B, out_channels*4, H, W)

    y_ref = jax.block_until_ready(reference(x, params, stride))
    # bf16 matmuls with f32 accumulation -> loosened tolerance vs the f32 reference
    np.testing.assert_allclose(np.asarray(y), np.asarray(y_ref), rtol=2e-2, atol=2e-2)

    print("KERNEL_OK")
</pallas_src>

<mosaic_0001>
module attributes {stable_mosaic.version = 11 : i64} {
  func.func @_mm_bias_act_kernel(%arg0: i32, %arg1: memref<128x16xbf16, #tpu.memory_space<vmem>>, %arg2: memref<16x32xbf16, #tpu.memory_space<vmem>>, %arg3: memref<1x32xf32, #tpu.memory_space<vmem>>, %arg4: memref<128x32xbf16, #tpu.memory_space<vmem>>) attributes {dimension_semantics = [#tpu.dimension_semantics<parallel>], iteration_bounds = array<i64: 1>, scalar_prefetch = 0 : i64, scratch_operands = 0 : i64, tpu.core_type = #tpu.core_type<tc>, window_params = [{transform_indices = @transform_0, window_bounds = array<i64: 128, 16>}, {pipeline_mode = #tpu.pipeline_mode<synchronous>, transform_indices = @transform_1, window_bounds = array<i64: 16, 32>}, {pipeline_mode = #tpu.pipeline_mode<synchronous>, transform_indices = @transform_2, window_bounds = array<i64: 1, 32>}, {transform_indices = @transform_3, window_bounds = array<i64: 128, 32>}]} {
    %c0 = arith.constant 0 : index
    %c0_0 = arith.constant 0 : index
    %0 = vector.load %arg1[%c0, %c0_0] : memref<128x16xbf16, #tpu.memory_space<vmem>>, vector<128x16xbf16>
    %c0_1 = arith.constant 0 : index
    %c0_2 = arith.constant 0 : index
    %1 = vector.load %arg2[%c0_1, %c0_2] : memref<16x32xbf16, #tpu.memory_space<vmem>>, vector<16x32xbf16>
    %cst = arith.constant dense<0.000000e+00> : vector<128x32xf32>
    %2 = tpu.matmul %0, %1, %cst {dimension_numbers = #tpu.dot_dimension_numbers<[1], [0], [0], [1], [0, 0, 1, 1], [], []>} : vector<128x16xbf16>, vector<16x32xbf16>, vector<128x32xf32> -> vector<128x32xf32>
    %c0_3 = arith.constant 0 : index
    %c0_4 = arith.constant 0 : index
    %3 = vector.load %arg3[%c0_3, %c0_4] : memref<1x32xf32, #tpu.memory_space<vmem>>, vector<1x32xf32>
    %4 = vector.broadcast %3 : vector<1x32xf32> to vector<128x32xf32>
    %5 = arith.addf %2, %4 : vector<128x32xf32>
    %cst_5 = arith.constant 0.000000e+00 : f32
    %6 = vector.broadcast %cst_5 : f32 to vector<128x32xf32>
    %7 = arith.maximumf %5, %6 : vector<128x32xf32>
    %8 = arith.truncf %7 : vector<128x32xf32> to vector<128x32xbf16>
    %c0_6 = arith.constant 0 : index
    %c0_7 = arith.constant 0 : index
    %9 = vector.load %arg4[%c0_6, %c0_7] : memref<128x32xbf16, #tpu.memory_space<vmem>>, vector<128x32xbf16>
    tpu.vector_store %arg4[%c0_6, %c0_7], %8 {strides = array<i32>} : memref<128x32xbf16, #tpu.memory_space<vmem>>, vector<128x32xbf16>,
    return
  }
  func.func @transform_0(%arg0: i32) -> (i32, i32) {
    %c0_i32 = arith.constant 0 : i32
    %c0_i32_0 = arith.constant 0 : i32
    return %arg0, %c0_i32 : i32, i32
  }
  func.func @transform_1(%arg0: i32) -> (i32, i32) {
    %c0_i32 = arith.constant 0 : i32
    %c0_i32_0 = arith.constant 0 : i32
    %c0_i32_1 = arith.constant 0 : i32
    return %c0_i32, %c0_i32_0 : i32, i32
  }
  func.func @transform_2(%arg0: i32) -> (i32, i32) {
    %c0_i32 = arith.constant 0 : i32
    %c0_i32_0 = arith.constant 0 : i32
    %c0_i32_1 = arith.constant 0 : i32
    return %c0_i32, %c0_i32_0 : i32, i32
  }
  func.func @transform_3(%arg0: i32) -> (i32, i32) {
    %c0_i32 = arith.constant 0 : i32
    %c0_i32_0 = arith.constant 0 : i32
    return %arg0, %c0_i32 : i32, i32
  }
}

</mosaic_0001>

<llo_original>
// kernel: tpu_custom_call.1
$region0: #{tpu_custom_call.1}
  #allocation0 [shape = 'u32[]', space=smem, size = 0x4, offset = 0x4, fixed_abs, tag = 'smem constant byte address 0x4 - core index']
  #allocation1 [shape = 'u32[144,128]{1,0:T(1,128)}', space=vmem, size = 0x12000, scoped, tag = 'internal scratch']
  %s0 = inlined_call_operand.vmem [shape: bf16[128,16], index: 0, kind: input, shape index: {}]
  %s1 = inlined_call_operand.vmem [shape: bf16[16,32], index: 1, kind: input, shape index: {}]
  %s2 = inlined_call_operand.vmem [shape: f32[1,32], index: 2, kind: input, shape index: {}]
  %s3 = inlined_call_operand.vmem [shape: bf16[128,32], index: 3, kind: output, shape index: {}]
  %s4 = sld [smem:[#allocation0]]
  $region22: #{tpu_custom_call.1} parent=0
    _
  %s6 = ssub.s32 1, %s4
  %s7 = scalar_select 0, %s6, %s4
  // Predicated region
  $region2: #{tpu_custom_call.1} parent=0 // pred_check
    _
  $region3: #{tpu_custom_call.1} parent=0 // pred_check_branch
    %9 = sbr.rel (0) target = $region5
  $region4: #{tpu_custom_call.1} parent=0 // pred_region
    _
  $region5: #{tpu_custom_call.1} parent=0 // pred_fallthru
    _
  // Predicated region
  $region6: #{tpu_custom_call.1} parent=0 // pred_check
    _
  $region7: #{tpu_custom_call.1} parent=0 // pred_check_branch
    %11 = sbr.rel (0) target = $region9
  $region8: #{tpu_custom_call.1} parent=0 // pred_region
    _
  $region9: #{tpu_custom_call.1} parent=0 // pred_fallthru
    _
  // Predicated region
  $region10: #{tpu_custom_call.1} parent=0 // pred_check
    _
  $region11: #{tpu_custom_call.1} parent=0 // pred_check_branch
    %13 = sbr.rel (0) target = $region13
  $region12: #{tpu_custom_call.1} parent=0 // pred_region
    _
  $region13: #{tpu_custom_call.1} parent=0 // pred_fallthru
    _
  %v15 = vld [vmem:[%s0] sm:$0xf]
  %v16 = vld [vmem:[%s0 + $0x4] sm:$0xf]
  %v17 = vld [vmem:[%s0 + $0x8] sm:$0xf]
  %v18 = vld [vmem:[%s0 + $0xc] sm:$0xf]
  %v19 = vld [vmem:[%s0 + $0x10] sm:$0xf]
  %v20 = vld [vmem:[%s0 + $0x14] sm:$0xf]
  %v21 = vld [vmem:[%s0 + $0x18] sm:$0xf]
  %v22 = vld [vmem:[%s0 + $0x1c] sm:$0xf]
  %v23 = vld [vmem:[%s0 + $0x20] sm:$0xf]
  %v24 = vld [vmem:[%s0 + $0x24] sm:$0xf]
  %v25 = vld [vmem:[%s0 + $0x28] sm:$0xf]
  %v26 = vld [vmem:[%s0 + $0x2c] sm:$0xf]
  %v27 = vld [vmem:[%s0 + $0x30] sm:$0xf]
  %v28 = vld [vmem:[%s0 + $0x34] sm:$0xf]
  %v29 = vld [vmem:[%s0 + $0x38] sm:$0xf]
  %v30 = vld [vmem:[%s0 + $0x3c] sm:$0xf]
  %v31 = vld [vmem:[%s1] sm:$0xf]
  %v32 = vld [vmem:[%s1 + $0x4] sm:$0xf]
  %v33 = vld [vmem:[%s2] sm:$0x1]
  %v35 = vlaneseq
  %v36 = vshrl.u32 %v35, 7
  %v37 = vsub.s32 0, %v36
  %v38 = vrot.slane %v33, %v37
  %v56 = vunpack.c.l.b16 %v15
  %v57 = vunpack.c.l.b16 %v16
  %v58 = vunpack.c.l.b16 %v17
  %v59 = vunpack.c.l.b16 %v18
  %v60 = vunpack.c.l.b16 %v19
  %v61 = vunpack.c.l.b16 %v20
  %v62 = vunpack.c.l.b16 %v21
  %v63 = vunpack.c.l.b16 %v22
  %v64 = vunpack.c.l.b16 %v23
  %v65 = vunpack.c.l.b16 %v24
  %v66 = vunpack.c.l.b16 %v25
  %v67 = vunpack.c.l.b16 %v26
  %v68 = vunpack.c.l.b16 %v27
  %v69 = vunpack.c.l.b16 %v28
  %v70 = vunpack.c.l.b16 %v29
  %v71 = vunpack.c.l.b16 %v30
  %v72 = vpack.c.b16 %v57, %v56
  %v73 = vpack.c.b16 %v59, %v58
  %v74 = vpack.c.b16 %v61, %v60
  %v75 = vpack.c.b16 %v63, %v62
  %v76 = vpack.c.b16 %v65, %v64
  %v77 = vpack.c.b16 %v67, %v66
  %v78 = vpack.c.b16 %v69, %v68
  %v79 = vpack.c.b16 %v71, %v70
  %v82 = vunpack.c.l.b16 %v31
  %v83 = vunpack.c.l.b16 %v32
  %v84 = vpack.c.b16 %v83, %v82
  %vm86 = vcmask 130048
  %v88 = vsel %vm86, %v72, 0
  %v91 = vsel %vm86, %v73, 0
  %v94 = vsel %vm86, %v74, 0
  %v97 = vsel %vm86, %v75, 0
  %v100 = vsel %vm86, %v76, 0
  %v103 = vsel %vm86, %v77, 0
  %v106 = vsel %vm86, %v78, 0
  %v109 = vsel %vm86, %v79, 0
  %111 = vmatprep.subr.bf16.mxu0 0
  %112 = vmatpush1.bf16.msra.mxu0 %v84
  %113 = vmatprep.subr.bf16.mxu0 0
  %114 = vmatpush1.bf16.msra.mxu0 0
  %115 = vmatprep.subr.bf16.mxu0 0
  %116 = vmatpush1.bf16.msra.mxu0 0
  %117 = vmatprep.subr.bf16.mxu0 0
  %118 = vmatpush1.bf16.msra.mxu0 0
  %119 = vmatprep.subr.bf16.mxu0 0
  %120 = vmatpush1.bf16.msra.mxu0 0
  %121 = vmatprep.subr.bf16.mxu0 0
  %122 = vmatpush1.bf16.msra.mxu0 0
  %123 = vmatprep.subr.bf16.mxu0 0
  %124 = vmatpush1.bf16.msra.mxu0 0
  %125 = vmatprep.subr.bf16.mxu0 0
  %126 = vmatpush1.bf16.msra.mxu0 0
  %127 = vmatprep.subr.bf16.mxu0 0
  %128 = vmatpush1.bf16.msra.mxu0 0
  %129 = vmatprep.subr.bf16.mxu0 0
  %130 = vmatpush1.bf16.msra.mxu0 0
  %131 = vmatprep.subr.bf16.mxu0 0
  %132 = vmatpush1.bf16.msra.mxu0 0
  %133 = vmatprep.subr.bf16.mxu0 0
  %134 = vmatpush1.bf16.msra.mxu0 0
  %135 = vmatprep.subr.bf16.mxu0 0
  %136 = vmatpush1.bf16.msra.mxu0 0
  %137 = vmatprep.subr.bf16.mxu0 0
  %138 = vmatpush1.bf16.msra.mxu0 0
  %139 = vmatprep.subr.bf16.mxu0 0
  %140 = vmatpush1.bf16.msra.mxu0 0
  %141 = vmatprep.subr.bf16.mxu0 0
  %142 = vmatpush1.bf16.msra.mxu0 0
  %143 = vmatprep.mubr.bf16.mxu0 0
  %144 = vmatmul.mubr.bf16.gmra.mrb[0].mxu0 %v88
  %v145 = vpop.f32.mrb[0].mxu0
  %v146 = vadd.f32 %v38, %v145
  %v147 = vpop.f32.mrb[0].mxu0
  %v148 = vpop.f32.mrb[0].mxu0
  %v149 = vadd.f32 %v38, %v148
  %v150 = vpop.f32.mrb[0].mxu0
  %151 = vmatprep.mubr.bf16.mxu0 0
  %152 = vmatmul.mubr.bf16.gmra.mrb[0].mxu0 %v91
  %v153 = vpop.f32.mrb[0].mxu0
  %v154 = vadd.f32 %v38, %v153
  %v155 = vpop.f32.mrb[0].mxu0
  %v156 = vpop.f32.mrb[0].mxu0
  %v157 = vadd.f32 %v38, %v156
  %v158 = vpop.f32.mrb[0].mxu0
  %159 = vmatprep.mubr.bf16.mxu0 0
  %160 = vmatmul.mubr.bf16.gmra.mrb[0].mxu0 %v94
  %v161 = vpop.f32.mrb[0].mxu0
  %v162 = vadd.f32 %v38, %v161
  %v163 = vpop.f32.mrb[0].mxu0
  %v164 = vpop.f32.mrb[0].mxu0
  %v165 = vadd.f32 %v38, %v164
  %v166 = vpop.f32.mrb[0].mxu0
  %167 = vmatprep.mubr.bf16.mxu0 0
  %168 = vmatmul.mubr.bf16.gmra.mrb[0].mxu0 %v97
  %v169 = vpop.f32.mrb[0].mxu0
  %v170 = vadd.f32 %v38, %v169
  %v171 = vpop.f32.mrb[0].mxu0
  %v172 = vpop.f32.mrb[0].mxu0
  %v173 = vadd.f32 %v38, %v172
  %v174 = vpop.f32.mrb[0].mxu0
  %175 = vmatprep.mubr.bf16.mxu0 0
  %176 = vmatmul.mubr.bf16.gmra.mrb[0].mxu0 %v100
  %v177 = vpop.f32.mrb[0].mxu0
  %v178 = vadd.f32 %v38, %v177
  %v179 = vpop.f32.mrb[0].mxu0
  %v180 = vpop.f32.mrb[0].mxu0
  %v181 = vadd.f32 %v38, %v180
  %v182 = vpop.f32.mrb[0].mxu0
  %183 = vmatprep.mubr.bf16.mxu0 0
  %184 = vmatmul.mubr.bf16.gmra.mrb[0].mxu0 %v103
  %v185 = vpop.f32.mrb[0].mxu0
  %v186 = vadd.f32 %v38, %v185
  %v187 = vpop.f32.mrb[0].mxu0
  %v188 = vpop.f32.mrb[0].mxu0
  %v189 = vadd.f32 %v38, %v188
  %v190 = vpop.f32.mrb[0].mxu0
  %191 = vmatprep.mubr.bf16.mxu0 0
  %192 = vmatmul.mubr.bf16.gmra.mrb[0].mxu0 %v106
  %v193 = vpop.f32.mrb[0].mxu0
  %v194 = vadd.f32 %v38, %v193
  %v195 = vpop.f32.mrb[0].mxu0
  %v196 = vpop.f32.mrb[0].mxu0
  %v197 = vadd.f32 %v38, %v196
  %v198 = vpop.f32.mrb[0].mxu0
  %199 = vmatprep.mubr.bf16.mxu0 0
  %200 = vmatmul.mubr.bf16.gmra.mrb[0].mxu0 %v109
  %v201 = vpop.f32.mrb[0].mxu0
  %v202 = vadd.f32 %v38, %v201
  %v203 = vpop.f32.mrb[0].mxu0
  %v204 = vpop.f32.mrb[0].mxu0
  %v205 = vadd.f32 %v38, %v204
  %v206 = vpop.f32.mrb[0].mxu0
  %207 = vdwg.mxu0
  %v208 = vmax.f32 %v146, 0.0
  %v209 = vmax.f32 %v149, 0.0
  %v210 = vmax.f32 %v154, 0.0
  %v211 = vmax.f32 %v157, 0.0
  %v212 = vmax.f32 %v162, 0.0
  %v213 = vmax.f32 %v165, 0.0
  %v214 = vmax.f32 %v170, 0.0
  %v215 = vmax.f32 %v173, 0.0
  %v216 = vmax.f32 %v178, 0.0
  %v217 = vmax.f32 %v181, 0.0
  %v218 = vmax.f32 %v186, 0.0
  %v219 = vmax.f32 %v189, 0.0
  %v220 = vmax.f32 %v194, 0.0
  %v221 = vmax.f32 %v197, 0.0
  %v222 = vmax.f32 %v202, 0.0
  %v223 = vmax.f32 %v205, 0.0
  %v224 = vpack.c.bf16 %v209, %v208
  %v225 = vpack.c.bf16 %v211, %v210
  %v226 = vpack.c.bf16 %v213, %v212
  %v227 = vpack.c.bf16 %v215, %v214
  %v228 = vpack.c.bf16 %v217, %v216
  %v229 = vpack.c.bf16 %v219, %v218
  %v230 = vpack.c.bf16 %v221, %v220
  %v231 = vpack.c.bf16 %v223, %v222
  %v240 = vunpack.c.l.b16 %v224
  %v241 = vunpack.c.h.b16 %v224
  %v242 = vunpack.c.l.b16 %v225
  %v243 = vunpack.c.h.b16 %v225
  %v244 = vunpack.c.l.b16 %v226
  %v245 = vunpack.c.h.b16 %v226
  %v246 = vunpack.c.l.b16 %v227
  %v247 = vunpack.c.h.b16 %v227
  %v248 = vunpack.c.l.b16 %v228
  %v249 = vunpack.c.h.b16 %v228
  %v250 = vunpack.c.l.b16 %v229
  %v251 = vunpack.c.h.b16 %v229
  %v252 = vunpack.c.l.b16 %v230
  %v253 = vunpack.c.h.b16 %v230
  %v254 = vunpack.c.l.b16 %v231
  %v255 = vunpack.c.h.b16 %v231
  %v256 = vpack.c.b16 %v240, %v240
  %v257 = vpack.c.b16 %v241, %v241
  %v258 = vpack.c.b16 %v242, %v242
  %v259 = vpack.c.b16 %v243, %v243
  %v260 = vpack.c.b16 %v244, %v244
  %v261 = vpack.c.b16 %v245, %v245
  %v262 = vpack.c.b16 %v246, %v246
  %v263 = vpack.c.b16 %v247, %v247
  %v264 = vpack.c.b16 %v248, %v248
  %v265 = vpack.c.b16 %v249, %v249
  %v266 = vpack.c.b16 %v250, %v250
  %v267 = vpack.c.b16 %v251, %v251
  %v268 = vpack.c.b16 %v252, %v252
  %v269 = vpack.c.b16 %v253, %v253
  %v270 = vpack.c.b16 %v254, %v254
  %v271 = vpack.c.b16 %v255, %v255
  %vm288 = vcmask 257024
  %289 = vst.msk [vmem:[%s3] sm:$0xf] %vm288, %v256
  %290 = vst.msk [vmem:[%s3 + $0x4] sm:$0xf] %vm288, %v257
  %291 = vst.msk [vmem:[%s3 + $0x8] sm:$0xf] %vm288, %v258
  %292 = vst.msk [vmem:[%s3 + $0xc] sm:$0xf] %vm288, %v259
  %293 = vst.msk [vmem:[%s3 + $0x10] sm:$0xf] %vm288, %v260
  %294 = vst.msk [vmem:[%s3 + $0x14] sm:$0xf] %vm288, %v261
  %295 = vst.msk [vmem:[%s3 + $0x18] sm:$0xf] %vm288, %v262
  %296 = vst.msk [vmem:[%s3 + $0x1c] sm:$0xf] %vm288, %v263
  %297 = vst.msk [vmem:[%s3 + $0x20] sm:$0xf] %vm288, %v264
  %298 = vst.msk [vmem:[%s3 + $0x24] sm:$0xf] %vm288, %v265
  %299 = vst.msk [vmem:[%s3 + $0x28] sm:$0xf] %vm288, %v266
  %300 = vst.msk [vmem:[%s3 + $0x2c] sm:$0xf] %vm288, %v267
  %301 = vst.msk [vmem:[%s3 + $0x30] sm:$0xf] %vm288, %v268
  %302 = vst.msk [vmem:[%s3 + $0x34] sm:$0xf] %vm288, %v269
  %303 = vst.msk [vmem:[%s3 + $0x38] sm:$0xf] %vm288, %v270
  %304 = vst.msk [vmem:[%s3 + $0x3c] sm:$0xf] %vm288, %v271
  // Predicated region
  $region14: #{tpu_custom_call.1} parent=0 // pred_check
    _
  $region15: #{tpu_custom_call.1} parent=0 // pred_check_branch
    %306 = sbr.rel (0) target = $region17
  $region16: #{tpu_custom_call.1} parent=0 // pred_region
    _
  $region17: #{tpu_custom_call.1} parent=0 // pred_fallthru
    _
  // Predicated region
  $region18: #{tpu_custom_call.1} parent=0 // pred_check
    _
  $region19: #{tpu_custom_call.1} parent=0 // pred_check_branch
    %308 = sbr.rel (0) target = $region21
  $region20: #{tpu_custom_call.1} parent=0 // pred_region
    _
  $region21: #{tpu_custom_call.1} parent=0 // pred_fallthru
    _

</llo_original>
